<compile_context>
chip_gen: v7x
topology: tpu7x:2x2x1
jax: 0.10.0
libtpu: 0.0.40
codegen_flags: <defaults>
</compile_context>

<pallas_src>
import math
import functools

import jax
import jax.numpy as jnp
import numpy as np
from jax.experimental import pallas as pl
from jax.experimental.pallas import tpu as pltpu

_VMEM_LIMIT = 64 * 1024 * 1024   # <= physical VMEM on v5e/v6e/v7x, > default scoped limit


# ----------------------------------------------------------------------------
# helpers
# ----------------------------------------------------------------------------

def _pick(dim, preferred, granule=128):
    """Largest tile <= preferred that divides `dim` and is a multiple of `granule`;
    if dim <= preferred (or dim isn't granule-aligned) fall back to the full dim."""
    if dim <= preferred:
        return dim
    if dim % granule == 0:
        cand = (preferred // granule) * granule
        while cand >= granule:
            if dim % cand == 0:
                return cand
            cand -= granule
    return dim


# ----------------------------------------------------------------------------
# tiled matmul:  y = [inv_rms(x) *] (x @ W') + b [+ residual]
#   - RMSNorm weight is folded into W' offline; inv_rms is computed in-kernel by
#     accumulating sum(x^2) over k tiles and applying rsqrt in the epilogue.
# ----------------------------------------------------------------------------

def _matmul_kernel(*refs, apply_rms, has_residual, eps, k_dim):
    idx = 0
    x_ref = refs[idx]; idx += 1
    w_ref = refs[idx]; idx += 1
    b_ref = refs[idx]; idx += 1
    if has_residual:
        res_ref = refs[idx]; idx += 1
    o_ref = refs[idx]; idx += 1
    acc_ref = refs[idx]; idx += 1
    if apply_rms:
        ss_ref = refs[idx]; idx += 1

    k = pl.program_id(2)

    @pl.when(k == 0)
    def _():
        acc_ref[...] = jnp.zeros_like(acc_ref)
        if apply_rms:
            ss_ref[...] = jnp.zeros_like(ss_ref)

    x = x_ref[...]
    acc_ref[...] += jnp.dot(x, w_ref[...], preferred_element_type=jnp.float32)
    if apply_rms:
        xf = x.astype(jnp.float32)
        ss_ref[...] += jnp.sum(xf * xf, axis=-1, keepdims=True)

    @pl.when(k == pl.num_programs(2) - 1)
    def _():
        out = acc_ref[...]
        if apply_rms:
            inv = jax.lax.rsqrt(ss_ref[...] / float(k_dim) + eps)
            out = out * inv
        out = out + b_ref[...].astype(jnp.float32)
        if has_residual:
            out = out + res_ref[...].astype(jnp.float32)
        o_ref[...] = out.astype(o_ref.dtype)


def fused_linear(x, w, b, *, residual=None, apply_rms=False, eps=1e-5,
                 tm=512, tn=512, tk=512):
    n, kdim = x.shape
    ndim = w.shape[1]
    tm = _pick(n, tm, 8)
    tn = _pick(ndim, tn, 128)
    tk = _pick(kdim, tk, 128)
    has_res = residual is not None

    in_specs = [pl.BlockSpec((tm, tk), lambda i, j, k: (i, k)),
                pl.BlockSpec((tk, tn), lambda i, j, k: (k, j)),
                pl.BlockSpec((1, tn), lambda i, j, k: (0, j))]
    args = [x, w, b.reshape(1, ndim)]
    if has_res:
        in_specs.append(pl.BlockSpec((tm, tn), lambda i, j, k: (i, j)))
        args.append(residual)

    scratch = [pltpu.VMEM((tm, tn), jnp.float32)]
    if apply_rms:
        scratch.append(pltpu.VMEM((tm, 1), jnp.float32))

    return pl.pallas_call(
        functools.partial(_matmul_kernel, apply_rms=apply_rms,
                          has_residual=has_res, eps=eps, k_dim=kdim),
        out_shape=jax.ShapeDtypeStruct((n, ndim), x.dtype),
        grid=(n // tm, ndim // tn, kdim // tk),
        in_specs=in_specs,
        out_specs=pl.BlockSpec((tm, tn), lambda i, j, k: (i, j)),
        scratch_shapes=scratch,
        compiler_params=pltpu.CompilerParams(
            dimension_semantics=("parallel", "parallel", "arbitrary"),
            vmem_limit_bytes=_VMEM_LIMIT),
    )(*args)


# ----------------------------------------------------------------------------
# FFN: RMSNorm (folded into w1/w3 + in-kernel inv_rms) + silu gate + w2 + residual,
# chunked over the hidden dim.
# ----------------------------------------------------------------------------

def _ffn_kernel(x_ref, w1_ref, b1_ref, w3_ref, b3_ref, w2_ref, b2_ref, res_ref,
                o_ref, acc_ref, inv_ref, *, eps):
    c = pl.program_id(1)

    @pl.when(c == 0)
    def _():
        acc_ref[...] = jnp.zeros_like(acc_ref)
        xf = x_ref[...].astype(jnp.float32)
        inv_ref[...] = jax.lax.rsqrt(jnp.mean(xf * xf, axis=-1, keepdims=True) + eps)

    x = x_ref[...]                      # raw bf16 straight into the MXU
    inv = inv_ref[...]                  # per-row inv-rms, computed once per row block
    h1 = jnp.dot(x, w1_ref[...], preferred_element_type=jnp.float32) * inv \
        + b1_ref[...].astype(jnp.float32)
    h3 = jnp.dot(x, w3_ref[...], preferred_element_type=jnp.float32) * inv \
        + b3_ref[...].astype(jnp.float32)
    gate = (h1 * jax.nn.sigmoid(h1)) * h3                  # silu(w1 x) * (w3 x)
    acc_ref[...] += jnp.dot(gate.astype(w2_ref.dtype), w2_ref[...],
                            preferred_element_type=jnp.float32)

    @pl.when(c == pl.num_programs(1) - 1)
    def _():
        o_ref[...] = (acc_ref[...] + b2_ref[...].astype(jnp.float32)
                      + res_ref[...].astype(jnp.float32)).astype(o_ref.dtype)


def fused_ffn(x, w1, b1, w3, b3, w2, b2, residual, *, eps,
              tm=256, th=256):
    # tm=256/th=256 keeps the working set well under v7x's 64 MiB/TC; on v5e/v6e
    # (128 MiB VMEM) tm can be raised to 512 to halve FFN weight re-reads.
    n, d = x.shape
    hdim = w1.shape[1]
    tm = _pick(n, tm, 8)
    th = _pick(hdim, th, 128)
    return pl.pallas_call(
        functools.partial(_ffn_kernel, eps=eps),
        out_shape=jax.ShapeDtypeStruct((n, d), x.dtype),
        grid=(n // tm, hdim // th),
        in_specs=[pl.BlockSpec((tm, d), lambda i, c: (i, 0)),
                  pl.BlockSpec((d, th), lambda i, c: (0, c)),
                  pl.BlockSpec((1, th), lambda i, c: (0, c)),
                  pl.BlockSpec((d, th), lambda i, c: (0, c)),
                  pl.BlockSpec((1, th), lambda i, c: (0, c)),
                  pl.BlockSpec((th, d), lambda i, c: (c, 0)),
                  pl.BlockSpec((1, d), lambda i, c: (0, 0)),
                  pl.BlockSpec((tm, d), lambda i, c: (i, 0))],
        out_specs=pl.BlockSpec((tm, d), lambda i, c: (i, 0)),
        scratch_shapes=[pltpu.VMEM((tm, d), jnp.float32),
                        pltpu.VMEM((tm, 1), jnp.float32)],
        compiler_params=pltpu.CompilerParams(
            dimension_semantics=("parallel", "arbitrary"),
            vmem_limit_bytes=_VMEM_LIMIT),
    )(x, w1, b1.reshape(1, hdim), w3, b3.reshape(1, hdim),
      w2, b2.reshape(1, d), residual)


# ----------------------------------------------------------------------------
# flash attention: q-tiled online softmax, causal tile skipping, in-kernel mask.
# The 1/sqrt(head_dim) scale is folded into wq/bq offline.
# ----------------------------------------------------------------------------

def _flash_attn_kernel(q_ref, k_ref, v_ref, o_ref, m_ref, l_ref, acc_ref,
                       *, tq, tkv):
    qi = pl.program_id(1)
    kj = pl.program_id(2)

    @pl.when(kj == 0)
    def _():
        m_ref[...] = jnp.full_like(m_ref, -jnp.inf)
        l_ref[...] = jnp.zeros_like(l_ref)
        acc_ref[...] = jnp.zeros_like(acc_ref)

    # causal skip: if this KV tile starts after the last query of the q tile, no work.
    @pl.when(kj * tkv <= qi * tq + (tq - 1))
    def _():
        q = q_ref[0]                       # (tq, hd)
        k = k_ref[0]                       # (tkv, hd)
        v = v_ref[0]                       # (tkv, hd)

        s = jax.lax.dot_general(q, k, (((1,), (1,)), ((), ())),
                                preferred_element_type=jnp.float32)   # (tq, tkv)

        q_pos = jax.lax.broadcasted_iota(jnp.int32, s.shape, 0) + qi * tq
        kv_pos = jax.lax.broadcasted_iota(jnp.int32, s.shape, 1) + kj * tkv
        s = jnp.where(q_pos >= kv_pos, s, jnp.float32(-1e30))

        m_prev = m_ref[...]
        m_new = jnp.maximum(m_prev, jnp.max(s, axis=-1, keepdims=True))
        alpha = jnp.exp(m_prev - m_new)
        p = jnp.exp(s - m_new)
        l_ref[...] = alpha * l_ref[...] + jnp.sum(p, axis=-1, keepdims=True)
        acc_ref[...] = alpha * acc_ref[...] + jnp.dot(
            p.astype(v.dtype), v, preferred_element_type=jnp.float32)
        m_ref[...] = m_new

    @pl.when(kj == pl.num_programs(2) - 1)
    def _():
        o_ref[0] = (acc_ref[...] *
                    pl.reciprocal(l_ref[...], approx=True)).astype(o_ref.dtype)


def flash_attention(q, k, v, *, tq=256, tkv=512):
    # q, k, v: (B*H, S, hd); output last dim == head_dim (lane-dense at hd=128).
    bh, s, hd = q.shape
    tq = _pick(s, tq, 8)
    tkv = _pick(s, tkv, 8)

    def kv_index(b, i, j):
        # clamp to the last causally-needed KV block so skipped steps re-use the
        # previously fetched block (no extra DMA traffic); compute is pl.when-gated.
        return (b, jnp.minimum(j, ((i + 1) * tq - 1) // tkv), 0)

    return pl.pallas_call(
        functools.partial(_flash_attn_kernel, tq=tq, tkv=tkv),
        out_shape=jax.ShapeDtypeStruct((bh, s, hd), q.dtype),
        grid=(bh, s // tq, s // tkv),
        in_specs=[pl.BlockSpec((1, tq, hd), lambda b, i, j: (b, i, 0)),
                  pl.BlockSpec((1, tkv, hd), kv_index),
                  pl.BlockSpec((1, tkv, hd), kv_index)],
        out_specs=pl.BlockSpec((1, tq, hd), lambda b, i, j: (b, i, 0)),
        scratch_shapes=[pltpu.VMEM((tq, 1), jnp.float32),
                        pltpu.VMEM((tq, 1), jnp.float32),
                        pltpu.VMEM((tq, hd), jnp.float32)],
        compiler_params=pltpu.CompilerParams(
            dimension_semantics=("parallel", "parallel", "arbitrary"),
            vmem_limit_bytes=_VMEM_LIMIT),
    )(q, k, v)


# ----------------------------------------------------------------------------
# XLA glue (layout + RoPE)
# ----------------------------------------------------------------------------

def apply_rope_rotate_half(x, cos, sin):
    # x: (B,S,H,hd) in rotate-half channel layout (wq/wk columns pre-permuted);
    # cos/sin: (S, hd//2). Mathematically identical to torch view_as_complex RoPE.
    half = x.shape[-1] // 2
    x1 = x[..., :half].astype(jnp.float32)
    x2 = x[..., half:].astype(jnp.float32)
    c = cos[None, :, None, :]
    s = sin[None, :, None, :]
    o1 = x1 * c - x2 * s
    o2 = x1 * s + x2 * c
    return jnp.concatenate([o1, o2], axis=-1).astype(x.dtype)


def transformer_block_forward(x, params, cos, sin):
    B, S, D = x.shape
    H = params["n_heads"]
    hd = D // H
    eps = params["eps"]
    x2d = x.reshape(B * S, D)

    # ---- attention branch: RMSNorm + QKV fused into a single matmul kernel ----
    qkv = fused_linear(x2d, params["wqkv"], params["bqkv"],
                       apply_rms=True, eps=eps)                       # (B*S, 3D)

    xq = qkv[:, 0 * D:1 * D].reshape(B, S, H, hd)
    xk = qkv[:, 1 * D:2 * D].reshape(B, S, H, hd)
    xv = qkv[:, 2 * D:3 * D].reshape(B, S, H, hd)

    xq = apply_rope_rotate_half(xq, cos, sin)
    xk = apply_rope_rotate_half(xk, cos, sin)

    qb = jnp.transpose(xq, (0, 2, 1, 3)).reshape(B * H, S, hd)
    kb = jnp.transpose(xk, (0, 2, 1, 3)).reshape(B * H, S, hd)
    vb = jnp.transpose(xv, (0, 2, 1, 3)).reshape(B * H, S, hd)

    attn = flash_attention(qb, kb, vb)                                # (B*H, S, hd)
    attn2d = jnp.transpose(attn.reshape(B, H, S, hd), (0, 2, 1, 3)).reshape(B * S, D)

    # wo projection with the residual (x + ...) fused into the epilogue
    h2d = fused_linear(attn2d, params["wo"], params["bo"], residual=x2d)

    # ---- feed-forward branch: norm + w1/w3 + silu gate + w2 + residual fused ----
    out2d = fused_ffn(h2d, params["w1"], params["b1"], params["w3"], params["b3"],
                      params["w2"], params["b2"], residual=h2d, eps=eps)
    return out2d.reshape(B, S, D)


# ----------------------------------------------------------------------------
# parameters
# ----------------------------------------------------------------------------

def make_params(key, dim, n_heads, multiple_of, eps=1e-5, dtype=jnp.bfloat16):
    # FFN hidden dim, same rule as the PyTorch module (ffn_dim_multiplier=None)
    hidden = int(2 * (4 * dim) / 3)
    hidden = multiple_of * ((hidden + multiple_of - 1) // multiple_of)

    keys = jax.random.split(key, 16)
    scale = 0.02

    def w(k, shape):
        return (scale * jax.random.normal(k, shape, dtype=jnp.float32)).astype(dtype)

    return {
        "n_heads": n_heads, "eps": eps,
        # non-trivial norm weights so the weight-folding path is actually exercised
        "attn_norm_w": (1.0 + 0.1 * jax.random.normal(keys[14], (dim,))).astype(dtype),
        "ffn_norm_w": (1.0 + 0.1 * jax.random.normal(keys[15], (dim,))).astype(dtype),
        # weights stored (in, out) so kernels compute x @ W + b
        "wq": w(keys[0], (dim, dim)), "bq": w(keys[1], (dim,)),
        "wk": w(keys[2], (dim, dim)), "bk": w(keys[3], (dim,)),
        "wv": w(keys[4], (dim, dim)), "bv": w(keys[5], (dim,)),
        "wo": w(keys[6], (dim, dim)), "bo": w(keys[7], (dim,)),
        "w1": w(keys[8], (dim, hidden)), "b1": w(keys[9], (hidden,)),
        "w3": w(keys[10], (dim, hidden)), "b3": w(keys[11], (hidden,)),
        "w2": w(keys[12], (hidden, dim)), "b2": w(keys[13], (dim,)),
    }


def _rope_perm_cols(w, n_heads):
    # reorder output channels per head: [even pairs, odd pairs] -> rotate-half layout.
    din, dout = w.shape
    hd = dout // n_heads
    wr = w.reshape(din, n_heads, hd)
    wr = jnp.concatenate([wr[..., 0::2], wr[..., 1::2]], axis=-1)
    return wr.reshape(din, dout)


def _rope_perm_vec(b, n_heads):
    hd = b.shape[0] // n_heads
    br = b.reshape(n_heads, hd)
    br = jnp.concatenate([br[..., 0::2], br[..., 1::2]], axis=-1)
    return br.reshape(-1)


def prepare_pallas_params(params):
    """Offline folds:
      * Q/K/V weights concatenated into one (dim, 3*dim) matmul
      * interleaved->rotate-half RoPE permutation folded into wq/wk columns
      * 1/sqrt(head_dim) attention scale folded into wq/bq
      * RMSNorm weights folded into wqkv / w1 / w3 (diag(g) @ W)
    """
    H = params["n_heads"]
    dim = params["wq"].shape[0]
    hd = dim // H
    sm_scale = 1.0 / math.sqrt(hd)
    dtype = params["wq"].dtype
    f32 = jnp.float32

    wq = _rope_perm_cols(params["wq"].astype(f32), H) * sm_scale
    bq = _rope_perm_vec(params["bq"].astype(f32), H) * sm_scale
    wk = _rope_perm_cols(params["wk"].astype(f32), H)
    bk = _rope_perm_vec(params["bk"].astype(f32), H)
    wv = params["wv"].astype(f32)
    bv = params["bv"].astype(f32)

    g_attn = params["attn_norm_w"].astype(f32)[:, None]
    g_ffn = params["ffn_norm_w"].astype(f32)[:, None]

    wqkv = jnp.concatenate([wq, wk, wv], axis=1) * g_attn
    bqkv = jnp.concatenate([bq, bk, bv])

    return {
        "n_heads": H, "eps": params["eps"],
        "wqkv": wqkv.astype(dtype), "bqkv": bqkv.astype(dtype),
        "wo": params["wo"], "bo": params["bo"],
        "w1": (params["w1"].astype(f32) * g_ffn).astype(dtype), "b1": params["b1"],
        "w3": (params["w3"].astype(f32) * g_ffn).astype(dtype), "b3": params["b3"],
        "w2": params["w2"], "b2": params["b2"],
    }


def make_freqs(seq_len, head_dim, theta=10000.0):
    freqs = 1.0 / (theta ** (jnp.arange(0, head_dim, 2, dtype=jnp.float32) / head_dim))
    t = jnp.arange(seq_len, dtype=jnp.float32)
    ang = jnp.outer(t, freqs)                   # (S, hd//2)
    return jnp.cos(ang), jnp.sin(ang)


# ----------------------------------------------------------------------------
# pure-JAX reference (original torch semantics, interleaved RoPE) for validation
# ----------------------------------------------------------------------------

def reference_forward(x, params, cos, sin):
    B, S, D = x.shape
    H = params["n_heads"]
    hd = D // H
    eps = params["eps"]
    xf = x.astype(jnp.float32)

    def rmsnorm(v, w):
        ms = jnp.mean(v * v, axis=-1, keepdims=True)
        return v * jax.lax.rsqrt(ms + eps) * w.astype(jnp.float32)

    def lin(v, w, b):
        return v @ w.astype(jnp.float32) + b.astype(jnp.float32)

    xa = rmsnorm(xf, params["attn_norm_w"])
    q = lin(xa, params["wq"], params["bq"]).reshape(B, S, H, hd)
    k = lin(xa, params["wk"], params["bk"]).reshape(B, S, H, hd)
    v = lin(xa, params["wv"], params["bv"]).reshape(B, S, H, hd)

    def rope_interleaved(t):
        t1 = t[..., 0::2]
        t2 = t[..., 1::2]
        c = cos[None, :, None, :]
        s = sin[None, :, None, :]
        o1 = t1 * c - t2 * s
        o2 = t1 * s + t2 * c
        return jnp.stack([o1, o2], axis=-1).reshape(t.shape)

    q = rope_interleaved(q)
    k = rope_interleaved(k)
    q, k, v = (jnp.transpose(a, (0, 2, 1, 3)) for a in (q, k, v))
    scores = jnp.einsum('bhqd,bhkd->bhqk', q, k) / jnp.sqrt(jnp.float32(hd))
    causal = jnp.tril(jnp.ones((S, S), bool))
    scores = jnp.where(causal[None, None], scores, -jnp.inf)
    p = jax.nn.softmax(scores, axis=-1)
    attn = jnp.einsum('bhqk,bhkd->bhqd', p, v)
    attn = jnp.transpose(attn, (0, 2, 1, 3)).reshape(B, S, D)
    h = xf + lin(attn, params["wo"], params["bo"])

    hn = rmsnorm(h, params["ffn_norm_w"])
    h1 = lin(hn, params["w1"], params["b1"])
    h3 = lin(hn, params["w3"], params["b3"])
    ff = lin(jax.nn.silu(h1) * h3, params["w2"], params["b2"])
    return h + ff


# ----------------------------------------------------------------------------
# main
# ----------------------------------------------------------------------------

if __name__ == "__main__":
    B, S = 2, 8
    dim, n_heads, multiple_of = 32, 4, 32
    head_dim = dim // n_heads
    eps = 1e-5
    dtype = jnp.bfloat16   # bf16 operands, f32 accumulation

    key = jax.random.PRNGKey(0)
    kx, kp = jax.random.split(key)
    x = jax.random.normal(kx, (B, S, dim), dtype=jnp.float32).astype(dtype)
    params = make_params(kp, dim, n_heads, multiple_of, eps=eps, dtype=dtype)
    pparams = prepare_pallas_params(params)
    cos, sin = make_freqs(S, head_dim)

    out = transformer_block_forward(x, pparams, cos, sin)
    out = jax.block_until_ready(out)

    assert out.shape == (B, S, dim)
    assert bool(jnp.all(jnp.isfinite(out.astype(jnp.float32))))

    ref = reference_forward(x, params, cos, sin)
    np.testing.assert_allclose(np.array(out.astype(jnp.float32)),
                               np.array(ref),
                               rtol=5e-2, atol=5e-2)
    print("KERNEL_OK")
</pallas_src>

<mosaic_0001>
module attributes {stable_mosaic.version = 11 : i64} {
  func.func @_matmul_kernel(%arg0: i32, %arg1: i32, %arg2: i32, %arg3: memref<16x32xbf16, #tpu.memory_space<vmem>>, %arg4: memref<32x96xbf16, #tpu.memory_space<vmem>>, %arg5: memref<1x96xbf16, #tpu.memory_space<vmem>>, %arg6: memref<16x96xbf16, #tpu.memory_space<vmem>>, %arg7: memref<16x96xf32, #tpu.memory_space<vmem>>, %arg8: memref<16x1xf32, #tpu.memory_space<vmem>>) attributes {dimension_semantics = [#tpu.dimension_semantics<parallel>, #tpu.dimension_semantics<parallel>, #tpu.dimension_semantics<arbitrary>], iteration_bounds = array<i64: 1, 1, 1>, scalar_prefetch = 0 : i64, scratch_operands = 2 : i64, tpu.core_type = #tpu.core_type<tc>, window_params = [{transform_indices = @transform_0, window_bounds = array<i64: 16, 32>}, {transform_indices = @transform_1, window_bounds = array<i64: 32, 96>}, {transform_indices = @transform_2, window_bounds = array<i64: 1, 96>}, {transform_indices = @transform_3, window_bounds = array<i64: 16, 96>}]} {
    %c0_i32 = arith.constant 0 : i32
    %0 = arith.cmpi eq, %arg2, %c0_i32 : i32
    %1 = arith.extui %0 : i1 to i32
    %c0_i32_0 = arith.constant 0 : i32
    %2 = arith.cmpi ne, %1, %c0_i32_0 : i32
    scf.if %2 {
      %cst_15 = arith.constant 0.000000e+00 : f32
      %19 = vector.broadcast %cst_15 : f32 to vector<16x96xf32>
      %c0_16 = arith.constant 0 : index
      %c0_17 = arith.constant 0 : index
      %20 = vector.load %arg7[%c0_16, %c0_17] : memref<16x96xf32, #tpu.memory_space<vmem>>, vector<16x96xf32>
      tpu.vector_store %arg7[%c0_16, %c0_17], %19 {strides = array<i32>} : memref<16x96xf32, #tpu.memory_space<vmem>>, vector<16x96xf32>,
      %cst_18 = arith.constant 0.000000e+00 : f32
      %21 = vector.broadcast %cst_18 : f32 to vector<16x1xf32>
      %c0_19 = arith.constant 0 : index
      %c0_20 = arith.constant 0 : index
      %22 = vector.load %arg8[%c0_19, %c0_20] : memref<16x1xf32, #tpu.memory_space<vmem>>, vector<16x1xf32>
      tpu.vector_store %arg8[%c0_19, %c0_20], %21 {strides = array<i32>} : memref<16x1xf32, #tpu.memory_space<vmem>>, vector<16x1xf32>,
    } else {
    }
    %c0 = arith.constant 0 : index
    %c0_1 = arith.constant 0 : index
    %3 = vector.load %arg3[%c0, %c0_1] : memref<16x32xbf16, #tpu.memory_space<vmem>>, vector<16x32xbf16>
    %c0_2 = arith.constant 0 : index
    %c0_3 = arith.constant 0 : index
    %4 = vector.load %arg7[%c0_2, %c0_3] : memref<16x96xf32, #tpu.memory_space<vmem>>, vector<16x96xf32>
    %c0_4 = arith.constant 0 : index
    %c0_5 = arith.constant 0 : index
    %5 = vector.load %arg4[%c0_4, %c0_5] : memref<32x96xbf16, #tpu.memory_space<vmem>>, vector<32x96xbf16>
    %cst = arith.constant dense<0.000000e+00> : vector<16x96xf32>
    %6 = tpu.matmul %3, %5, %cst {dimension_numbers = #tpu.dot_dimension_numbers<[1], [0], [0], [1], [0, 0, 1, 1], [], []>} : vector<16x32xbf16>, vector<32x96xbf16>, vector<16x96xf32> -> vector<16x96xf32>
    %7 = arith.addf %4, %6 : vector<16x96xf32>
    %c0_6 = arith.constant 0 : index
    %c0_7 = arith.constant 0 : index
    %8 = vector.load %arg7[%c0_6, %c0_7] : memref<16x96xf32, #tpu.memory_space<vmem>>, vector<16x96xf32>
    tpu.vector_store %arg7[%c0_6, %c0_7], %7 {strides = array<i32>} : memref<16x96xf32, #tpu.memory_space<vmem>>, vector<16x96xf32>,
    %9 = arith.extf %3 : vector<16x32xbf16> to vector<16x32xf32>
    %c0_8 = arith.constant 0 : index
    %c0_9 = arith.constant 0 : index
    %10 = vector.load %arg8[%c0_8, %c0_9] : memref<16x1xf32, #tpu.memory_space<vmem>>, vector<16x1xf32>
    %11 = arith.mulf %9, %9 : vector<16x32xf32>
    %cst_10 = arith.constant dense<0.000000e+00> : vector<16xf32>
    %12 = vector.multi_reduction <add>, %11, %cst_10 [1] : vector<16x32xf32> to vector<16xf32>
    %13 = vector.shape_cast %12 : vector<16xf32> to vector<16x1xf32>
    %14 = arith.addf %10, %13 : vector<16x1xf32>
    %c0_11 = arith.constant 0 : index
    %c0_12 = arith.constant 0 : index
    %15 = vector.load %arg8[%c0_11, %c0_12] : memref<16x1xf32, #tpu.memory_space<vmem>>, vector<16x1xf32>
    tpu.vector_store %arg8[%c0_11, %c0_12], %14 {strides = array<i32>} : memref<16x1xf32, #tpu.memory_space<vmem>>, vector<16x1xf32>,
    %c0_i32_13 = arith.constant 0 : i32
    %16 = arith.cmpi eq, %arg2, %c0_i32_13 : i32
    %17 = arith.extui %16 : i1 to i32
    %c0_i32_14 = arith.constant 0 : i32
    %18 = arith.cmpi ne, %17, %c0_i32_14 : i32
    scf.if %18 {
      %c0_15 = arith.constant 0 : index
      %c0_16 = arith.constant 0 : index
      %19 = vector.load %arg7[%c0_15, %c0_16] : memref<16x96xf32, #tpu.memory_space<vmem>>, vector<16x96xf32>
      %c0_17 = arith.constant 0 : index
      %c0_18 = arith.constant 0 : index
      %20 = vector.load %arg8[%c0_17, %c0_18] : memref<16x1xf32, #tpu.memory_space<vmem>>, vector<16x1xf32>
      %cst_19 = arith.constant 3.200000e+01 : f32
      %21 = vector.broadcast %cst_19 : f32 to vector<16x1xf32>
      %22 = arith.divf %20, %21 : vector<16x1xf32>
      %cst_20 = arith.constant 9.99999974E-6 : f32
      %23 = vector.broadcast %cst_20 : f32 to vector<16x1xf32>
      %24 = arith.addf %22, %23 : vector<16x1xf32>
      %25 = math.rsqrt %24 : vector<16x1xf32>
      %26 = vector.broadcast %25 : vector<16x1xf32> to vector<16x96xf32>
      %27 = arith.mulf %19, %26 : vector<16x96xf32>
      %c0_21 = arith.constant 0 : index
      %c0_22 = arith.constant 0 : index
      %28 = vector.load %arg5[%c0_21, %c0_22] : memref<1x96xbf16, #tpu.memory_space<vmem>>, vector<1x96xbf16>
      %29 = arith.extf %28 : vector<1x96xbf16> to vector<1x96xf32>
      %30 = vector.broadcast %29 : vector<1x96xf32> to vector<16x96xf32>
      %31 = arith.addf %27, %30 : vector<16x96xf32>
      %32 = arith.truncf %31 : vector<16x96xf32> to vector<16x96xbf16>
      %c0_23 = arith.constant 0 : index
      %c0_24 = arith.constant 0 : index
      %33 = vector.load %arg6[%c0_23, %c0_24] : memref<16x96xbf16, #tpu.memory_space<vmem>>, vector<16x96xbf16>
      tpu.vector_store %arg6[%c0_23, %c0_24], %32 {strides = array<i32>} : memref<16x96xbf16, #tpu.memory_space<vmem>>, vector<16x96xbf16>,
    } else {
    }
    return
  }
  func.func @transform_0(%arg0: i32, %arg1: i32, %arg2: i32) -> (i32, i32) {
    %c0_i32 = arith.constant 0 : i32
    return %arg0, %arg2 : i32, i32
  }
  func.func @transform_1(%arg0: i32, %arg1: i32, %arg2: i32) -> (i32, i32) {
    %c0_i32 = arith.constant 0 : i32
    return %arg2, %arg1 : i32, i32
  }
  func.func @transform_2(%arg0: i32, %arg1: i32, %arg2: i32) -> (i32, i32) {
    %c0_i32 = arith.constant 0 : i32
    %c0_i32_0 = arith.constant 0 : i32
    return %c0_i32, %arg1 : i32, i32
  }
  func.func @transform_3(%arg0: i32, %arg1: i32, %arg2: i32) -> (i32, i32) {
    %c0_i32 = arith.constant 0 : i32
    return %arg0, %arg1 : i32, i32
  }
}

</mosaic_0001>

<llo_original>
// kernel: tpu_custom_call.1
$region0: #{tpu_custom_call.1}
  #allocation0 [shape = 'u32[]', space=smem, size = 0x4, offset = 0x4, fixed_abs, tag = 'smem constant byte address 0x4 - core index']
  #allocation1 [shape = 'u32[144,128]{1,0:T(1,128)}', space=vmem, size = 0x12000, scoped, tag = 'internal scratch']
  #allocation2 [shape = 'f32[16,96]{1,0:T(8,128)}', space=vmem, size = 0x2000, scoped, tag = 'scratch operand']
  #allocation3 [shape = 'f32[16,1]{1,0:T(8,128)}', space=vmem, size = 0x2000, scoped, tag = 'scratch operand']
  %s0 = inlined_call_operand.hbm [shape: bf16[16,32], index: 0, kind: input, shape index: {}]
  %s1 = inlined_call_operand.hbm [shape: bf16[32,96], index: 1, kind: input, shape index: {}]
  %s2 = inlined_call_operand.hbm [shape: bf16[1,96], index: 2, kind: input, shape index: {}]
  %s3 = inlined_call_operand.hbm [shape: bf16[16,96], index: 3, kind: output, shape index: {}]
  %s4 = sld [smem:[#allocation0]]
  $region42: #{tpu_custom_call.1} parent=0
    _
  %s6 = ssub.s32 1, %s4
  %s7 = scalar_select 0, %s6, %s4
  $region1: #{tpu_custom_call.1} parent=0
    #allocation4 [shape = 'u8[4096]{0}', space=vmem, size = 0x1000, scoped, tag = 'input window, operand 0, single buffered']
    #allocation5 [shape = 's32[1]{0}', space=sflag, size = 0x4, scoped, tag = 'scoped memory for tpu_custom_call.1']
    #allocation6 [shape = 's32[1]{0}', space=sflag, size = 0x4, scoped, tag = 'scoped memory for tpu_custom_call.1']
    #allocation7 [shape = 'u8[8192]{0}', space=vmem, size = 0x2000, scoped, tag = 'input window, operand 1, single buffered']
    #allocation8 [shape = 's32[1]{0}', space=sflag, size = 0x4, scoped, tag = 'scoped memory for tpu_custom_call.1']
    #allocation9 [shape = 'u8[512]{0}', space=vmem, size = 0x400, scoped, tag = 'input window, operand 2, single buffered']
    #allocation10 [shape = 'u8[4096]{0}', space=vmem, size = 0x1000, scoped, tag = 'output window, operand 0, single buffered']
    %8 = vsyncpa [#allocation5], 0
    %9 = vsyncpa [#allocation8], 0
    %10 = vsyncpa [#allocation6], 0
    // Predicated region
    $region2: #{tpu_custom_call.1} parent=1 // pred_check
      _
    $region3: #{tpu_custom_call.1} parent=1 // pred_check_branch
      %12 = sbr.rel (0) target = $region5
    $region4: #{tpu_custom_call.1} parent=1 // pred_region
      %s14 = ssub.s32 128, 128
      %15 = vsyncadd [#allocation5], %s14
      %s16 = sshll.u32 [#allocation4], 4
      %s17 = int_to_ptr.vmem [resolvable:$true] %s16
      %22 = dma.hbm_to_vmem [thread:$0]  %s0, 128, %s17, [#allocation5], 64, 64, 4
    $region5: #{tpu_custom_call.1} parent=1 // pred_fallthru
      _
    // Predicated region
    $region6: #{tpu_custom_call.1} parent=1 // pred_check
      _
    $region7: #{tpu_custom_call.1} parent=1 // pred_check_branch
      %24 = sbr.rel (0) target = $region9
    $region8: #{tpu_custom_call.1} parent=1 // pred_region
      %s26 = ssub.s32 256, 256
      %27 = vsyncadd [#allocation8], %s26
      %s28 = sshll.u32 [#allocation7], 4
      %s29 = int_to_ptr.vmem [resolvable:$true] %s28
      %34 = dma.hbm_to_vmem [thread:$0]  %s1, 256, %s29, [#allocation8], 64, 64, 4
    $region9: #{tpu_custom_call.1} parent=1 // pred_fallthru
      _
    // Predicated region
    $region10: #{tpu_custom_call.1} parent=1 // pred_check
      _
    $region11: #{tpu_custom_call.1} parent=1 // pred_check_branch
      %36 = sbr.rel (0) target = $region13
    $region12: #{tpu_custom_call.1} parent=1 // pred_region
      %s38 = ssub.s32 16, 16
      %39 = vsyncadd [#allocation8], %s38
      %s41 = sshll.u32 [#allocation9], 4
      %s42 = int_to_ptr.vmem [resolvable:$true] %s41
      %44 = dma.hbm_to_vmem [thread:$0]  %s2, 16, %s42, [#allocation8]
    $region13: #{tpu_custom_call.1} parent=1 // pred_fallthru
      _
    // Predicated region
    $region14: #{tpu_custom_call.1} parent=1 // pred_check
      _
    $region15: #{tpu_custom_call.1} parent=1 // pred_check_branch
      %46 = sbr.rel (0) target = $region17
    $region16: #{tpu_custom_call.1} parent=1 // pred_region
      %47 = dma.done [#allocation5], 128
    $region17: #{tpu_custom_call.1} parent=1 // pred_fallthru
      _
    // Predicated region
    $region18: #{tpu_custom_call.1} parent=1 // pred_check
      _
    $region19: #{tpu_custom_call.1} parent=1 // pred_check_branch
      %49 = sbr.rel (0) target = $region21
    $region20: #{tpu_custom_call.1} parent=1 // pred_region
      %50 = dma.done [#allocation8], 256
    $region21: #{tpu_custom_call.1} parent=1 // pred_fallthru
      _
    // Predicated region
    $region22: #{tpu_custom_call.1} parent=1 // pred_check
      _
    $region23: #{tpu_custom_call.1} parent=1 // pred_check_branch
      %52 = sbr.rel (0) target = $region25
    $region24: #{tpu_custom_call.1} parent=1 // pred_region
      %53 = dma.done [#allocation8], 16
    $region25: #{tpu_custom_call.1} parent=1 // pred_fallthru
      _
    %p55 = scmp.eq.s32.totalorder 0, 0
    // Predicated region
    $region26: #{tpu_custom_call.1} parent=1 // pred_check
      %p56 = pneg %p55
    $region27: #{tpu_custom_call.1} parent=1 // pred_check_branch
      %58 = sbr.rel (%p56) target = $region29
    $region28: #{tpu_custom_call.1} parent=1 // pred_region
      %vm59 = vcmask 785408
      %60 = vst.msk [vmem:[#allocation2] sm:$0xff] %vm59, 0.0
      %61 = vst.msk [vmem:[#allocation2 + $0x8] sm:$0xff] %vm59, 0.0
      %vm62 = vcmask 7168
      %63 = vst.msk [vmem:[#allocation3] sm:$0xff] %vm62, 0.0
      %64 = vst.msk [vmem:[#allocation3 + $0x8] sm:$0xff] %vm62, 0.0
    $region29: #{tpu_custom_call.1} parent=1 // pred_fallthru
      _
    %v65 = vld [vmem:[#allocation4] sm:$0xf]
    %v66 = vld [vmem:[#allocation4 + $0x4] sm:$0xf]
    %v67 = vld [vmem:[#allocation2] sm:$0xff]
    %v68 = vld [vmem:[#allocation2 + $0x8] sm:$0xff]
    %v69 = vld [vmem:[#allocation7] sm:$0xf]
    %v70 = vld [vmem:[#allocation7 + $0x4] sm:$0xf]
    %v71 = vld [vmem:[#allocation7 + $0x8] sm:$0xf]
    %v72 = vld [vmem:[#allocation7 + $0xc] sm:$0xf]
    %v75 = vunpack.c.l.b16 %v65
    %v76 = vunpack.c.l.b16 %v66
    %v77 = vpack.c.b16 %v76, %v75
    %v82 = vunpack.c.l.b16 %v69
    %v83 = vunpack.c.l.b16 %v70
    %v84 = vunpack.c.l.b16 %v71
    %v85 = vunpack.c.l.b16 %v72
    %v86 = vpack.c.b16 %v83, %v82
    %v87 = vpack.c.b16 %v85, %v84
    %vm90 = vcmask 261120
    %v92 = vsel %vm90, %v77, 0
    %94 = vmatprep.subr.bf16.mxu0 0
    %95 = vmatpush1.bf16.msra.mxu0 %v86
    %96 = vmatprep.subr.bf16.mxu0 0
    %97 = vmatpush1.bf16.msra.mxu0 %v87
    %98 = vmatprep.subr.bf16.mxu0 0
    %99 = vmatpush1.bf16.msra.mxu0 0
    %100 = vmatprep.subr.bf16.mxu0 0
    %101 = vmatpush1.bf16.msra.mxu0 0
    %102 = vmatprep.subr.bf16.mxu0 0
    %103 = vmatpush1.bf16.msra.mxu0 0
    %104 = vmatprep.subr.bf16.mxu0 0
    %105 = vmatpush1.bf16.msra.mxu0 0
    %106 = vmatprep.subr.bf16.mxu0 0
    %107 = vmatpush1.bf16.msra.mxu0 0
    %108 = vmatprep.subr.bf16.mxu0 0
    %109 = vmatpush1.bf16.msra.mxu0 0
    %110 = vmatprep.subr.bf16.mxu0 0
    %111 = vmatpush1.bf16.msra.mxu0 0
    %112 = vmatprep.subr.bf16.mxu0 0
    %113 = vmatpush1.bf16.msra.mxu0 0
    %114 = vmatprep.subr.bf16.mxu0 0
    %115 = vmatpush1.bf16.msra.mxu0 0
    %116 = vmatprep.subr.bf16.mxu0 0
    %117 = vmatpush1.bf16.msra.mxu0 0
    %118 = vmatprep.subr.bf16.mxu0 0
    %119 = vmatpush1.bf16.msra.mxu0 0
    %120 = vmatprep.subr.bf16.mxu0 0
    %121 = vmatpush1.bf16.msra.mxu0 0
    %122 = vmatprep.subr.bf16.mxu0 0
    %123 = vmatpush1.bf16.msra.mxu0 0
    %124 = vmatprep.subr.bf16.mxu0 0
    %125 = vmatpush1.bf16.msra.mxu0 0
    %126 = vmatprep.mubr.bf16.mxu0 0
    %127 = vmatmul.mubr.bf16.gmra.mrb[0].mxu0 %v92
    %v128 = vpop.f32.mrb[0].mxu0
    %v129 = vadd.f32 0.0, %v128
    %v130 = vpop.f32.mrb[0].mxu0
    %v131 = vpop.f32.mrb[0].mxu0
    %v132 = vadd.f32 0.0, %v131
    %v133 = vpop.f32.mrb[0].mxu0
    %134 = vdwg.mxu0
    %v135 = vadd.f32 %v67, %v129
    %v136 = vadd.f32 %v68, %v132
    %vm137 = vcmask 785408
    %138 = vst.msk [vmem:[#allocation2] sm:$0xff] %vm137, %v135
    %139 = vst.msk [vmem:[#allocation2 + $0x8] sm:$0xff] %vm137, %v136
    %v140 = vunpack.c.l.bf16 %v65
    %v141 = vunpack.c.l.bf16 %v66
    %v142 = vld [vmem:[#allocation3] sm:$0xff]
    %v143 = vld [vmem:[#allocation3 + $0x8] sm:$0xff]
    %v144 = vmul.f32 %v140, %v140
    %v145 = vmul.f32 %v141, %v141
    %v146 = vsel %vm90, %v144, 0.0
    %147 = vadd.xlane.f32.xlu0 %v146
    %v148 = vpop.xlane.xlu0 %147
    %v149 = vsel %vm90, %v145, 0.0
    %150 = vadd.xlane.f32.xlu0 %v149
    %v151 = vpop.xlane.xlu0 %150
    %v152 = vadd.f32 %v142, %v148
    %v153 = vadd.f32 %v143, %v151
    %vm154 = vcmask 7168
    %155 = vst.msk [vmem:[#allocation3] sm:$0xff] %vm154, %v152
    %156 = vst.msk [vmem:[#allocation3 + $0x8] sm:$0xff] %vm154, %v153
    // Predicated region
    $region30: #{tpu_custom_call.1} parent=1 // pred_check
      %p157 = pneg %p55
    $region31: #{tpu_custom_call.1} parent=1 // pred_check_branch
      %159 = sbr.rel (%p157) target = $region33
    $region32: #{tpu_custom_call.1} parent=1 // pred_region
      %v160 = vld [vmem:[#allocation2] sm:$0xff]
      %v161 = vld [vmem:[#allocation2 + $0x8] sm:$0xff]
      %v162 = vld [vmem:[#allocation3] sm:$0xff]
      %v163 = vld [vmem:[#allocation3 + $0x8] sm:$0xff]
      %v164 = vrcp.pop 32.0
      %v165 = vmul.f32 %v162, %v164
      %v166 = vmul.f32 %v163, %v164
      %v167 = vadd.f32 %v165, 1e-05
      %v168 = vadd.f32 %v166, 1e-05
      %v169 = vrsqrt.pop %v167
      %v170 = vrsqrt.pop %v168
      %172 = vset.pattern.permute.xlu0 0
      %173 = vperm.xlu0 %172, %v169
      %v174 = vpop.permute.xlu0 %173
      %177 = vset.pattern.permute.xlu0 0
      %178 = vperm.xlu0 %177, %v170
      %v179 = vpop.permute.xlu0 %178
      %v181 = vmul.f32 %v160, %v174
      %v182 = vmul.f32 %v161, %v179
      %v183 = vld [vmem:[#allocation9] sm:$0x1]
      %v184 = vunpack.c.l.bf16 %v183
      %v185 = vlaneseq
      %v186 = vshrl.u32 %v185, 7
      %v187 = vsub.s32 0, %v186
      %v188 = vrot.slane %v184, %v187
      %v189 = vadd.f32 %v181, %v188
      %v190 = vadd.f32 %v182, %v188
      %v191 = vpack.c.bf16 %v190, %v189
      %v193 = vunpack.c.l.b16 %v191
      %v194 = vunpack.c.h.b16 %v191
      %v195 = vpack.c.b16 %v193, %v193
      %v196 = vpack.c.b16 %v194, %v194
      %vm199 = vcmask 781312
      %200 = vst.msk [vmem:[#allocation10] sm:$0xf] %vm199, %v195
      %201 = vst.msk [vmem:[#allocation10 + $0x4] sm:$0xf] %vm199, %v196
    $region33: #{tpu_custom_call.1} parent=1 // pred_fallthru
      _
    // Predicated region
    $region34: #{tpu_custom_call.1} parent=1 // pred_check
      _
    $region35: #{tpu_custom_call.1} parent=1 // pred_check_branch
      %203 = sbr.rel (0) target = $region37
    $region36: #{tpu_custom_call.1} parent=1 // pred_region
      %s205 = ssub.s32 128, 128
      %206 = vsyncadd [#allocation6], %s205
      %s207 = sshll.u32 [#allocation10], 4
      %s208 = int_to_ptr.vmem [resolvable:$true] %s207
      %213 = dma.vmem_to_hbm [thread:$0]  %s208, 128, %s3, [#allocation6], 64, 64, 4
    $region37: #{tpu_custom_call.1} parent=1 // pred_fallthru
      _
    // Predicated region
    $region38: #{tpu_custom_call.1} parent=1 // pred_check
      _
    $region39: #{tpu_custom_call.1} parent=1 // pred_check_branch
      %215 = sbr.rel (0) target = $region41
    $region40: #{tpu_custom_call.1} parent=1 // pred_region
      %216 = dma.done [#allocation6], 128
    $region41: #{tpu_custom_call.1} parent=1 // pred_fallthru
      _
    %217 = vsyncpa [#allocation5], 1
    %218 = vsyncpa [#allocation8], 1
    %219 = vsyncpa [#allocation6], 1

</llo_original>
